<compile_context>
chip_gen: v5e
topology: v5e:2x2
jax: 0.10.0
libtpu: 0.0.40
codegen_flags: <defaults>
</compile_context>

<pallas_src>
import functools
import math

import jax
import jax.numpy as jnp
import numpy as np
from jax.experimental import pallas as pl
from jax.experimental.pallas import tpu as pltpu

LN_EPS = 1e-5                 # torch.nn.LayerNorm default
MXU_DTYPE = jnp.bfloat16      # MXU operand dtype; accumulation stays f32
NEG_INF = -1e9                # matches torch masked_fill(-1e9)


# ----------------------------------------------------------------------------
# Hardware-generation budgets & small helpers
# ----------------------------------------------------------------------------
@functools.lru_cache(maxsize=None)
def _hw_budget():
    """(row_block, vmem_limit_bytes, ffn_hidden_tile) chosen per TPU generation."""
    try:
        vmem = int(pltpu.get_tpu_info().vmem_capacity_bytes)
    except Exception:                                   # conservative fallback
        return 256, 32 * 1024 * 1024, 2048
    if vmem >= 96 * 1024 * 1024:                        # v5e / v6e: 128 MiB VMEM
        return 512, 64 * 1024 * 1024, 4096
    return 256, 40 * 1024 * 1024, 2048                  # v7x: 64 MiB VMEM


@functools.lru_cache(maxsize=None)
def _single_buffer_supported():
    """Probe (once) whether pipeline_mode=pl.Buffered(1) works for constant-index blocks."""
    if not hasattr(pl, "Buffered"):
        return False
    try:
        def probe(x_ref, w_ref, o_ref):
            o_ref[...] = x_ref[...] + w_ref[...]

        x = jnp.arange(16 * 128, dtype=jnp.float32).reshape(16, 128)
        w = jnp.ones((8, 128), jnp.float32)
        out = pl.pallas_call(
            probe,
            grid=(2,),
            in_specs=[pl.BlockSpec((8, 128), lambda i: (i, 0)),
                      pl.BlockSpec((8, 128), lambda i: (0, 0),
                                   pipeline_mode=pl.Buffered(1))],
            out_specs=pl.BlockSpec((8, 128), lambda i: (i, 0)),
            out_shape=jax.ShapeDtypeStruct((16, 128), jnp.float32),
        )(x, w)
        return bool(np.allclose(np.asarray(jax.block_until_ready(out)),
                                np.asarray(x) + 1.0))
    except Exception:                                   # any failure -> default buffering
        return False


def _resident(shape):
    """BlockSpec for a block whose index never changes (weights / biases / LN params).
    Single-buffered when supported — no point double-buffering a constant block."""
    index_map = lambda *_: (0,) * len(shape)            # noqa: E731
    if _single_buffer_supported():
        return pl.BlockSpec(shape, index_map, pipeline_mode=pl.Buffered(1))
    return pl.BlockSpec(shape, index_map)


def _row_block(n):
    rb, _, _ = _hw_budget()
    return n if n <= rb else rb


def _hidden_tile(d_hidden):
    _, _, max_tile = _hw_budget()
    if d_hidden <= max_tile:
        return d_hidden
    t = (max_tile // 128) * 128
    while t >= 128:
        if d_hidden % t == 0:
            return t
        t -= 128
    return d_hidden                                     # no 128-aligned divisor: untiled


def _compiler_params(dim_semantics):
    _, vmem_limit, _ = _hw_budget()
    return pltpu.CompilerParams(dimension_semantics=dim_semantics,
                                vmem_limit_bytes=vmem_limit)


# ----------------------------------------------------------------------------
# Pallas kernels
# ----------------------------------------------------------------------------
def _linear_kernel(x_ref, w_ref, b_ref, o_ref):
    # y = x @ W + b     (W resident in bf16; f32 accumulation)
    y = jnp.dot(x_ref[...].astype(MXU_DTYPE), w_ref[...],
                preferred_element_type=jnp.float32) + b_ref[...]
    o_ref[...] = y.astype(o_ref.dtype)


def _proj_add_ln_kernel(x_ref, w_ref, b_ref, res_ref, g_ref, beta_ref, o_ref, *, eps):
    # y = LayerNorm(x @ W + b + residual)
    y = jnp.dot(x_ref[...].astype(MXU_DTYPE), w_ref[...],
                preferred_element_type=jnp.float32) + b_ref[...]
    y = y + res_ref[...].astype(jnp.float32)
    mu = jnp.mean(y, axis=-1, keepdims=True)
    var = jnp.mean(jnp.square(y - mu), axis=-1, keepdims=True)
    o_ref[...] = ((y - mu) * jax.lax.rsqrt(var + eps) * g_ref[...]
                  + beta_ref[...]).astype(o_ref.dtype)


def _ffn_kernel(x_ref, w1_ref, b1_ref, w2_ref, b2_ref, g_ref, beta_ref, o_ref,
                acc_ref, *, eps):
    # Hidden dim is K-tiled: acc += relu(x @ W1[:, j] + b1[j]) @ W2[j, :];
    # finalize (bias + residual + LayerNorm) on the last hidden tile only.
    j = pl.program_id(1)

    @pl.when(j == 0)
    def _():
        acc_ref[...] = jnp.zeros_like(acc_ref)

    h = jnp.dot(x_ref[...].astype(MXU_DTYPE), w1_ref[...],
                preferred_element_type=jnp.float32) + b1_ref[...]
    h = jnp.maximum(h, 0.0)
    acc_ref[...] += jnp.dot(h.astype(MXU_DTYPE), w2_ref[...],
                            preferred_element_type=jnp.float32)

    @pl.when(j == pl.num_programs(1) - 1)
    def _():
        y = acc_ref[...] + b2_ref[...] + x_ref[...].astype(jnp.float32)
        mu = jnp.mean(y, axis=-1, keepdims=True)
        var = jnp.mean(jnp.square(y - mu), axis=-1, keepdims=True)
        o_ref[...] = ((y - mu) * jax.lax.rsqrt(var + eps) * g_ref[...]
                      + beta_ref[...]).astype(o_ref.dtype)


def _attn_head_kernel(q_ref, k_ref, v_ref, *rest, scale, with_bias, with_probs):
    # One (batch, q-tile, head) step: scores -> softmax -> context for a single head.
    idx = 0
    bias_ref = None
    if with_bias:
        bias_ref = rest[idx]
        idx += 1
    o_ref = rest[idx]
    idx += 1
    p_ref = rest[idx] if with_probs else None

    q = (q_ref[0, 0] * scale).astype(MXU_DTYPE)     # scale folded into Q (Lq*d_k muls)
    k = k_ref[0, 0].astype(MXU_DTYPE)
    s = jax.lax.dot_general(q, k, (((1,), (1,)), ((), ())),   # contract d_k, no K^T copy
                            preferred_element_type=jnp.float32)
    if with_bias:
        s = s + bias_ref[0]                         # precomputed additive mask bias
    s = s - jnp.max(s, axis=-1, keepdims=True)
    e = jnp.exp(s)
    # EUP approx reciprocal: probs sum to 1 only to ~bf16-level accuracy.
    p = e * pl.reciprocal(jnp.sum(e, axis=-1, keepdims=True), approx=True)
    ctx = jnp.dot(p.astype(MXU_DTYPE), v_ref[0, 0].astype(MXU_DTYPE),
                  preferred_element_type=jnp.float32)
    o_ref[0, 0] = ctx.astype(o_ref.dtype)
    if with_probs:
        p_ref[0, 0] = p.astype(p_ref.dtype)


# ----------------------------------------------------------------------------
# Pallas wrappers
# ----------------------------------------------------------------------------
def pallas_linear(x, w, b):
    n, d_in = x.shape
    d_out = w.shape[1]
    rb = _row_block(n)
    return pl.pallas_call(
        _linear_kernel,
        grid=(pl.cdiv(n, rb),),
        in_specs=[pl.BlockSpec((rb, d_in), lambda i: (i, 0)),   # token tile
                  _resident((d_in, d_out)),                     # bf16 weight (resident)
                  _resident((1, d_out))],                       # bias (resident)
        out_specs=pl.BlockSpec((rb, d_out), lambda i: (i, 0)),
        out_shape=jax.ShapeDtypeStruct((n, d_out), x.dtype),
        compiler_params=_compiler_params(("parallel",)),
    )(x, w, b.reshape(1, -1))


def pallas_proj_add_ln(x, w, b, residual, gamma, beta):
    n, d_in = x.shape
    d_out = w.shape[1]
    rb = _row_block(n)
    return pl.pallas_call(
        functools.partial(_proj_add_ln_kernel, eps=LN_EPS),
        grid=(pl.cdiv(n, rb),),
        in_specs=[pl.BlockSpec((rb, d_in), lambda i: (i, 0)),
                  _resident((d_in, d_out)),
                  _resident((1, d_out)),
                  pl.BlockSpec((rb, d_out), lambda i: (i, 0)),  # residual token tile
                  _resident((1, d_out)),
                  _resident((1, d_out))],
        out_specs=pl.BlockSpec((rb, d_out), lambda i: (i, 0)),
        out_shape=jax.ShapeDtypeStruct((n, d_out), x.dtype),
        compiler_params=_compiler_params(("parallel",)),
    )(x, w, b.reshape(1, -1), residual, gamma.reshape(1, -1), beta.reshape(1, -1))


def pallas_ffn(x, w1, b1, w2, b2, gamma, beta):
    n, d_model = x.shape
    d_hidden = w1.shape[1]
    rb = _row_block(n)
    hk = _hidden_tile(d_hidden)
    return pl.pallas_call(
        functools.partial(_ffn_kernel, eps=LN_EPS),
        grid=(pl.cdiv(n, rb), d_hidden // hk),
        in_specs=[pl.BlockSpec((rb, d_model), lambda i, j: (i, 0)),   # x (resident over j)
                  pl.BlockSpec((d_model, hk), lambda i, j: (0, j)),   # W1 column tile
                  pl.BlockSpec((1, hk), lambda i, j: (0, j)),         # b1 tile
                  pl.BlockSpec((hk, d_model), lambda i, j: (j, 0)),   # W2 row tile
                  _resident((1, d_model)),                            # b2
                  _resident((1, d_model)),                            # gamma
                  _resident((1, d_model))],                           # beta
        out_specs=pl.BlockSpec((rb, d_model), lambda i, j: (i, 0)),
        out_shape=jax.ShapeDtypeStruct((n, d_model), x.dtype),
        scratch_shapes=[pltpu.VMEM((rb, d_model), jnp.float32)],      # f32 accumulator
        compiler_params=_compiler_params(("parallel", "arbitrary")),
    )(x, w1, b1.reshape(1, -1), w2, b2.reshape(1, -1),
      gamma.reshape(1, -1), beta.reshape(1, -1))


def pallas_attention(q, k, v, bias, *, return_probs=True):
    """q: (B,H,Lq,d_k)  k: (B,H,Lk,d_k)  v: (B,H,Lk,d_v)
    bias: (B,Lq,Lk) additive mask bias (0 = attend, -1e9 = masked) or None."""
    B, H, Lq, d_k = q.shape
    Lk, d_v = v.shape[2], v.shape[3]
    tq_max, _, _ = _hw_budget()
    tq = Lq if Lq <= tq_max else tq_max
    # head axis innermost: the (b, q-tile) mask-bias block stays resident across heads.
    grid = (B, pl.cdiv(Lq, tq), H)

    in_specs = [pl.BlockSpec((1, 1, tq, d_k), lambda b, qi, h: (b, h, qi, 0)),
                pl.BlockSpec((1, 1, Lk, d_k), lambda b, qi, h: (b, h, 0, 0)),
                pl.BlockSpec((1, 1, Lk, d_v), lambda b, qi, h: (b, h, 0, 0))]
    arrays = [q, k, v]
    if bias is not None:
        in_specs.append(pl.BlockSpec((1, tq, Lk), lambda b, qi, h: (b, qi, 0)))
        arrays.append(bias)

    out_specs = [pl.BlockSpec((1, 1, tq, d_v), lambda b, qi, h: (b, h, qi, 0))]
    out_shape = [jax.ShapeDtypeStruct((B, H, Lq, d_v), q.dtype)]
    if return_probs:
        out_specs.append(pl.BlockSpec((1, 1, tq, Lk), lambda b, qi, h: (b, h, qi, 0)))
        out_shape.append(jax.ShapeDtypeStruct((B, H, Lq, Lk), jnp.float32))

    kern = functools.partial(_attn_head_kernel, scale=1.0 / math.sqrt(d_k),
                             with_bias=bias is not None, with_probs=return_probs)
    res = pl.pallas_call(
        kern,
        grid=grid,
        in_specs=in_specs,
        out_specs=out_specs,
        out_shape=out_shape,
        compiler_params=_compiler_params(("parallel", "parallel", "parallel")),
    )(*arrays)
    return (res[0], res[1]) if return_probs else (res[0], None)


# ----------------------------------------------------------------------------
# Module-level composition
# ----------------------------------------------------------------------------
def _split_heads(x, n_heads):
    B, L, hd = x.shape
    return x.reshape(B, L, n_heads, hd // n_heads).transpose(0, 2, 1, 3)


def _mask_to_bias(mask, B, Lq, Lk):
    if mask is None:
        return None                                   # no-mask kernel variant: zero mask DMA
    m = mask.astype(jnp.float32)
    if m.ndim == 4:                                   # (B, 1, Lq, Lk) -> drop head axis
        m = m[:, 0]
    m = jnp.broadcast_to(m, (B, Lq, Lk))
    # Additive bias computed once per forward (not per head inside the kernel).
    return jnp.where(m > 0, 0.0, jnp.float32(NEG_INF))


def multi_head_attention(p, q_in, kv_in, mask, *, n_heads, d_k, d_v,
                         self_attention, return_probs=True):
    B, Lq, d_model = q_in.shape
    Lk = kv_in.shape[1]
    hk = n_heads * d_k

    if self_attention:
        # One fused [Wq|Wk|Wv] matmul (weights pre-fused + pre-cast at param-prep time).
        qkv = pallas_linear(q_in.reshape(-1, d_model), p["w_qkv"], p["b_qkv"])
        qkv = qkv.reshape(B, Lq, -1)
        q4 = _split_heads(qkv[..., :hk], n_heads)
        k4 = _split_heads(qkv[..., hk:2 * hk], n_heads)
        v4 = _split_heads(qkv[..., 2 * hk:], n_heads)
    else:
        # Q matmul on the decoder stream + fused [Wk|Wv] matmul on the encoder stream.
        q4 = _split_heads(
            pallas_linear(q_in.reshape(-1, d_model), p["w_q"], p["b_q"]).reshape(B, Lq, -1),
            n_heads)
        kv = pallas_linear(kv_in.reshape(-1, d_model), p["w_kv"], p["b_kv"])
        kv = kv.reshape(B, Lk, -1)
        k4 = _split_heads(kv[..., :hk], n_heads)
        v4 = _split_heads(kv[..., hk:], n_heads)

    bias = _mask_to_bias(mask, B, Lq, Lk)
    ctx4, attn = pallas_attention(q4, k4, v4, bias, return_probs=return_probs)

    # (B,H,Lq,d_v) -> lane-dense (B*Lq, H*d_v) for the fused out-proj + residual + LN.
    ctx = ctx4.transpose(0, 2, 1, 3).reshape(B * Lq, n_heads * d_v)
    out = pallas_proj_add_ln(ctx, p["w_o"], p["b_o"],
                             q_in.reshape(B * Lq, d_model), p["ln_g"], p["ln_b"])
    return out.reshape(B, Lq, d_model), attn


def positionwise_ffn(p, x):
    B, L, d_model = x.shape
    out = pallas_ffn(x.reshape(B * L, d_model), p["w1"], p["b1"],
                     p["w2"], p["b2"], p["ln_g"], p["ln_b"])
    return out.reshape(B, L, d_model)


def decoder_layer(prepared, dec_input, enc_output, slf_attn_mask=None,
                  inter_attn_mask=None, *, n_heads, d_k, d_v):
    """`prepared` must come from prepare_decoder_params (fused + bf16-cast weights)."""
    out, slf_attn = multi_head_attention(
        prepared["slf_attn"], dec_input, dec_input, slf_attn_mask,
        n_heads=n_heads, d_k=d_k, d_v=d_v, self_attention=True)
    out, inter_attn = multi_head_attention(
        prepared["inter_attn"], out, enc_output, inter_attn_mask,
        n_heads=n_heads, d_k=d_k, d_v=d_v, self_attention=False)
    out = positionwise_ffn(prepared["fc"], out)
    return out, slf_attn, inter_attn


# ----------------------------------------------------------------------------
# Parameter preparation (hoisted weight fusion + bf16 casts — done once)
# ----------------------------------------------------------------------------
def prepare_mha_params(p, *, self_attention):
    prepared = dict(w_o=p["wo"].astype(MXU_DTYPE), b_o=p["bo"],
                    ln_g=p["ln_g"], ln_b=p["ln_b"])
    if self_attention:
        prepared["w_qkv"] = jnp.concatenate(
            [p["wq"], p["wk"], p["wv"]], axis=1).astype(MXU_DTYPE)
        prepared["b_qkv"] = jnp.concatenate([p["bq"], p["bk"], p["bv"]])
    else:
        prepared["w_q"] = p["wq"].astype(MXU_DTYPE)
        prepared["b_q"] = p["bq"]
        prepared["w_kv"] = jnp.concatenate([p["wk"], p["wv"]], axis=1).astype(MXU_DTYPE)
        prepared["b_kv"] = jnp.concatenate([p["bk"], p["bv"]])
    return prepared


def prepare_ffn_params(p):
    return dict(w1=p["w1"].astype(MXU_DTYPE), b1=p["b1"],
                w2=p["w2"].astype(MXU_DTYPE), b2=p["b2"],
                ln_g=p["ln_g"], ln_b=p["ln_b"])


def prepare_decoder_params(params):
    return dict(slf_attn=prepare_mha_params(params["slf_attn"], self_attention=True),
                inter_attn=prepare_mha_params(params["inter_attn"], self_attention=False),
                fc=prepare_ffn_params(params["fc"]))


# ----------------------------------------------------------------------------
# Pure-JAX f32 reference (same math) for correctness check
# ----------------------------------------------------------------------------
def _ln_ref(x, g, b):
    mu = jnp.mean(x, axis=-1, keepdims=True)
    var = jnp.mean(jnp.square(x - mu), axis=-1, keepdims=True)
    return (x - mu) * jax.lax.rsqrt(var + LN_EPS) * g + b


def _mha_ref(p, q_in, k_in, v_in, mask, n_heads, d_k, d_v):
    B, Lq, d_model = q_in.shape
    Lk = k_in.shape[1]
    if mask is None:
        mask = jnp.ones((B, 1, Lq, Lk), jnp.float32)
    q = (q_in.reshape(-1, d_model) @ p["wq"] + p["bq"]).reshape(B, Lq, n_heads, d_k).transpose(0, 2, 1, 3)
    k = (k_in.reshape(-1, d_model) @ p["wk"] + p["bk"]).reshape(B, Lk, n_heads, d_k).transpose(0, 2, 1, 3)
    v = (v_in.reshape(-1, d_model) @ p["wv"] + p["bv"]).reshape(B, Lk, n_heads, d_v).transpose(0, 2, 1, 3)
    s = jnp.einsum("bhqd,bhkd->bhqk", q, k) / jnp.sqrt(jnp.float32(d_k))
    s = jnp.where(mask > 0, s, NEG_INF)
    attn = jax.nn.softmax(s, axis=-1)
    ctx = jnp.einsum("bhqk,bhkd->bhqd", attn, v).transpose(0, 2, 1, 3).reshape(B * Lq, n_heads * d_v)
    out = _ln_ref(ctx @ p["wo"] + p["bo"] + q_in.reshape(B * Lq, d_model), p["ln_g"], p["ln_b"])
    return out.reshape(B, Lq, d_model), attn


def _ffn_ref(p, x):
    B, L, d = x.shape
    xf = x.reshape(-1, d)
    y = jnp.maximum(xf @ p["w1"] + p["b1"], 0.0) @ p["w2"] + p["b2"]
    return _ln_ref(y + xf, p["ln_g"], p["ln_b"]).reshape(B, L, d)


def decoder_layer_ref(params, dec_input, enc_output, slf_mask, inter_mask, *, n_heads, d_k, d_v):
    out, a1 = _mha_ref(params["slf_attn"], dec_input, dec_input, dec_input, slf_mask, n_heads, d_k, d_v)
    out, a2 = _mha_ref(params["inter_attn"], out, enc_output, enc_output, inter_mask, n_heads, d_k, d_v)
    return _ffn_ref(params["fc"], out), a1, a2


# ----------------------------------------------------------------------------
# Deterministic parameter init
# ----------------------------------------------------------------------------
def init_mha_params(key, d_model, n_heads, d_k, d_v):
    ks = jax.random.split(key, 4)
    std = 0.05
    return dict(
        wq=std * jax.random.normal(ks[0], (d_model, n_heads * d_k), jnp.float32),
        bq=jnp.zeros((n_heads * d_k,), jnp.float32),
        wk=std * jax.random.normal(ks[1], (d_model, n_heads * d_k), jnp.float32),
        bk=jnp.zeros((n_heads * d_k,), jnp.float32),
        wv=std * jax.random.normal(ks[2], (d_model, n_heads * d_v), jnp.float32),
        bv=jnp.zeros((n_heads * d_v,), jnp.float32),
        wo=std * jax.random.normal(ks[3], (n_heads * d_v, d_model), jnp.float32),
        bo=jnp.zeros((d_model,), jnp.float32),
        ln_g=jnp.ones((d_model,), jnp.float32),
        ln_b=jnp.zeros((d_model,), jnp.float32),
    )


def init_ffn_params(key, d_model, d_hidden):
    ks = jax.random.split(key, 2)
    std = 0.05
    return dict(
        w1=std * jax.random.normal(ks[0], (d_model, d_hidden), jnp.float32),
        b1=jnp.zeros((d_hidden,), jnp.float32),
        w2=std * jax.random.normal(ks[1], (d_hidden, d_model), jnp.float32),
        b2=jnp.zeros((d_model,), jnp.float32),
        ln_g=jnp.ones((d_model,), jnp.float32),
        ln_b=jnp.zeros((d_model,), jnp.float32),
    )


if __name__ == "__main__":
    # Small shapes consistent with DecoderLayer(d_model, d_hidden, n_heads, d_k, d_v)
    B, L_dec, L_enc = 2, 8, 8
    d_model, d_hidden, n_heads, d_k, d_v = 32, 64, 2, 16, 16

    key = jax.random.PRNGKey(0)
    k_params, k_dec, k_enc = jax.random.split(key, 3)
    kp1, kp2, kp3 = jax.random.split(k_params, 3)

    params = dict(
        slf_attn=init_mha_params(kp1, d_model, n_heads, d_k, d_v),
        inter_attn=init_mha_params(kp2, d_model, n_heads, d_k, d_v),
        fc=init_ffn_params(kp3, d_model, d_hidden),
    )
    # Weight fusion + bf16 casts done ONCE here (not per forward call).
    prepared = jax.block_until_ready(prepare_decoder_params(params))

    dec_input = jax.random.normal(k_dec, (B, L_dec, d_model), jnp.float32)
    enc_output = jax.random.normal(k_enc, (B, L_enc, d_model), jnp.float32)

    # causal mask for self-attention (1 = attend, 0 = masked); inter mask = None
    slf_mask = jnp.tril(jnp.ones((L_dec, L_dec), jnp.float32))[None, None]
    slf_mask = jnp.broadcast_to(slf_mask, (B, 1, L_dec, L_dec))
    inter_mask = None   # None => attention kernel variant with no mask operand at all

    out, slf_attn, inter_attn = decoder_layer(
        prepared, dec_input, enc_output, slf_mask, inter_mask,
        n_heads=n_heads, d_k=d_k, d_v=d_v)
    jax.block_until_ready((out, slf_attn, inter_attn))

    ref_out, ref_slf, ref_inter = decoder_layer_ref(
        params, dec_input, enc_output, slf_mask, inter_mask,
        n_heads=n_heads, d_k=d_k, d_v=d_v)

    # Tolerances reflect bf16 MXU operands (f32 accumulation) vs the pure-f32 reference.
    np.testing.assert_allclose(np.asarray(out), np.asarray(ref_out), rtol=2e-2, atol=2e-2)
    np.testing.assert_allclose(np.asarray(slf_attn), np.asarray(ref_slf), rtol=2e-2, atol=2e-2)
    np.testing.assert_allclose(np.asarray(inter_attn), np.asarray(ref_inter), rtol=2e-2, atol=2e-2)

    assert out.shape == (B, L_dec, d_model)
    assert slf_attn.shape == (B, n_heads, L_dec, L_dec)
    assert inter_attn.shape == (B, n_heads, L_dec, L_enc)
    print("KERNEL_OK")
</pallas_src>

<mosaic_0001>
module attributes {stable_mosaic.version = 11 : i64} {
  func.func @probe(%arg0: i32, %arg1: memref<8x128xf32, #tpu.memory_space<vmem>>, %arg2: memref<8x128xf32, #tpu.memory_space<vmem>>, %arg3: memref<8x128xf32, #tpu.memory_space<vmem>>) attributes {dimension_semantics = [#tpu.dimension_semantics<arbitrary>], iteration_bounds = array<i64: 2>, scalar_prefetch = 0 : i64, scratch_operands = 0 : i64, tpu.core_type = #tpu.core_type<tc>, window_params = [{transform_indices = @transform_0, window_bounds = array<i64: 8, 128>}, {pipeline_mode = #tpu.pipeline_mode<synchronous>, transform_indices = @transform_1, window_bounds = array<i64: 8, 128>}, {transform_indices = @transform_2, window_bounds = array<i64: 8, 128>}]} {
    %c0 = arith.constant 0 : index
    %c0_0 = arith.constant 0 : index
    %0 = vector.load %arg1[%c0, %c0_0] : memref<8x128xf32, #tpu.memory_space<vmem>>, vector<8x128xf32>
    %c0_1 = arith.constant 0 : index
    %c0_2 = arith.constant 0 : index
    %1 = vector.load %arg2[%c0_1, %c0_2] : memref<8x128xf32, #tpu.memory_space<vmem>>, vector<8x128xf32>
    %2 = arith.addf %0, %1 : vector<8x128xf32>
    %c0_3 = arith.constant 0 : index
    %c0_4 = arith.constant 0 : index
    %3 = vector.load %arg3[%c0_3, %c0_4] : memref<8x128xf32, #tpu.memory_space<vmem>>, vector<8x128xf32>
    tpu.vector_store %arg3[%c0_3, %c0_4], %2 {strides = array<i32>} : memref<8x128xf32, #tpu.memory_space<vmem>>, vector<8x128xf32>,
    return
  }
  func.func @transform_0(%arg0: i32) -> (i32, i32) {
    %c0_i32 = arith.constant 0 : i32
    %c0_i32_0 = arith.constant 0 : i32
    return %arg0, %c0_i32 : i32, i32
  }
  func.func @transform_1(%arg0: i32) -> (i32, i32) {
    %c0_i32 = arith.constant 0 : i32
    %c0_i32_0 = arith.constant 0 : i32
    %c0_i32_1 = arith.constant 0 : i32
    return %c0_i32, %c0_i32_0 : i32, i32
  }
  func.func @transform_2(%arg0: i32) -> (i32, i32) {
    %c0_i32 = arith.constant 0 : i32
    %c0_i32_0 = arith.constant 0 : i32
    return %arg0, %c0_i32 : i32, i32
  }
}

module attributes {stable_mosaic.version = 11 : i64} {
  func.func @_linear_kernel(%arg0: i32, %arg1: memref<16x32xf32, #tpu.memory_space<vmem>>, %arg2: memref<32x96xbf16, #tpu.memory_space<vmem>>, %arg3: memref<1x96xf32, #tpu.memory_space<vmem>>, %arg4: memref<16x96xf32, #tpu.memory_space<vmem>>) attributes {dimension_semantics = [#tpu.dimension_semantics<parallel>], iteration_bounds = array<i64: 1>, scalar_prefetch = 0 : i64, scratch_operands = 0 : i64, tpu.core_type = #tpu.core_type<tc>, window_params = [{transform_indices = @transform_0, window_bounds = array<i64: 16, 32>}, {pipeline_mode = #tpu.pipeline_mode<synchronous>, transform_indices = @transform_1, window_bounds = array<i64: 32, 96>}, {pipeline_mode = #tpu.pipeline_mode<synchronous>, transform_indices = @transform_2, window_bounds = array<i64: 1, 96>}, {transform_indices = @transform_3, window_bounds = array<i64: 16, 96>}]} {
    %c0 = arith.constant 0 : index
    %c0_0 = arith.constant 0 : index
    %0 = vector.load %arg1[%c0, %c0_0] : memref<16x32xf32, #tpu.memory_space<vmem>>, vector<16x32xf32>
    %1 = arith.truncf %0 : vector<16x32xf32> to vector<16x32xbf16>
    %c0_1 = arith.constant 0 : index
    %c0_2 = arith.constant 0 : index
    %2 = vector.load %arg2[%c0_1, %c0_2] : memref<32x96xbf16, #tpu.memory_space<vmem>>, vector<32x96xbf16>
    %cst = arith.constant dense<0.000000e+00> : vector<16x96xf32>
    %3 = tpu.matmul %1, %2, %cst {dimension_numbers = #tpu.dot_dimension_numbers<[1], [0], [0], [1], [0, 0, 1, 1], [], []>} : vector<16x32xbf16>, vector<32x96xbf16>, vector<16x96xf32> -> vector<16x96xf32>
    %c0_3 = arith.constant 0 : index
    %c0_4 = arith.constant 0 : index
    %4 = vector.load %arg3[%c0_3, %c0_4] : memref<1x96xf32, #tpu.memory_space<vmem>>, vector<1x96xf32>
    %5 = vector.broadcast %4 : vector<1x96xf32> to vector<16x96xf32>
    %6 = arith.addf %3, %5 : vector<16x96xf32>
    %c0_5 = arith.constant 0 : index
    %c0_6 = arith.constant 0 : index
    %7 = vector.load %arg4[%c0_5, %c0_6] : memref<16x96xf32, #tpu.memory_space<vmem>>, vector<16x96xf32>
    tpu.vector_store %arg4[%c0_5, %c0_6], %6 {strides = array<i32>} : memref<16x96xf32, #tpu.memory_space<vmem>>, vector<16x96xf32>,
    return
  }
  func.func @transform_0(%arg0: i32) -> (i32, i32) {
    %c0_i32 = arith.constant 0 : i32
    %c0_i32_0 = arith.constant 0 : i32
    return %arg0, %c0_i32 : i32, i32
  }
  func.func @transform_1(%arg0: i32) -> (i32, i32) {
    %c0_i32 = arith.constant 0 : i32
    %c0_i32_0 = arith.constant 0 : i32
    %c0_i32_1 = arith.constant 0 : i32
    return %c0_i32, %c0_i32_0 : i32, i32
  }
  func.func @transform_2(%arg0: i32) -> (i32, i32) {
    %c0_i32 = arith.constant 0 : i32
    %c0_i32_0 = arith.constant 0 : i32
    %c0_i32_1 = arith.constant 0 : i32
    return %c0_i32, %c0_i32_0 : i32, i32
  }
  func.func @transform_3(%arg0: i32) -> (i32, i32) {
    %c0_i32 = arith.constant 0 : i32
    %c0_i32_0 = arith.constant 0 : i32
    return %arg0, %c0_i32 : i32, i32
  }
}

</mosaic_0001>

<llo_original>
// kernel: tpu_custom_call.1
$region0: #{tpu_custom_call.1}
  #allocation0 [shape = 'u32[]', space=smem, size = 0x4, offset = 0x4, fixed_abs, tag = 'smem constant byte address 0x4 - core index']
  #allocation1 [shape = 'u32[72,128]{1,0:T(1,128)}', space=vmem, size = 0x9000, scoped, tag = 'internal scratch']
  %s0 = inlined_call_operand.hbm [shape: f32[16,128], index: 0, kind: input, shape index: {}]
  %s1 = inlined_call_operand.hbm [shape: f32[8,128], index: 1, kind: input, shape index: {}]
  %s2 = inlined_call_operand.hbm [shape: f32[16,128], index: 2, kind: output, shape index: {}]
  %s3 = sld [smem:[#allocation0]]
  $region49: #{tpu_custom_call.1} parent=0
    _
  %s5 = ssub.s32 1, %s3
  %s6 = scalar_select 0, %s5, %s3
  $region1: #{tpu_custom_call.1} parent=0
    #allocation2 [shape = 'u8[8192]{0}', space=vmem, size = 0x2000, scoped, tag = 'input window, operand 0']
    #allocation3 [shape = 's32[2]{0}', space=sflag, size = 0x8, scoped, tag = 'scoped memory for tpu_custom_call.1']
    #allocation4 [shape = 's32[2]{0}', space=sflag, size = 0x8, scoped, tag = 'scoped memory for tpu_custom_call.1']
    #allocation5 [shape = 'u8[4096]{0}', space=vmem, size = 0x1000, scoped, tag = 'input window, operand 1, single buffered']
    #allocation6 [shape = 's32[1]{0}', space=sflag, size = 0x4, scoped, tag = 'scoped memory for tpu_custom_call.1']
    #allocation7 [shape = 'u8[8192]{0}', space=vmem, size = 0x2000, scoped, tag = 'output window, operand 0']
    %7 = vsyncpa [#allocation3], 0
    %s8 = scalar_lea.sflag [#allocation3], 1
    %9 = vsyncpa %s8, 0
    %10 = vsyncpa [#allocation6], 0
    %11 = vsyncpa [#allocation4], 0
    %s12 = scalar_lea.sflag [#allocation4], 1
    %13 = vsyncpa %s12, 0
    loop: start=0, step=1, limit=4
    $region2: #{tpu_custom_call.1} parent=1 // loop_pre_header
      _
    $region3: #{tpu_custom_call.1} parent=1 // loop_header
      %s15 = sphi 0, %s19
      %p16 = scmp.ge.s32.totalorder %s15, 4
      %s25 = sphi 0, %s27
      %s28 = sphi 0, %s25
      %s29 = sphi 0, %s28
      %s45 = sphi 0, %s29
      %s49 = sphi 0, %s49
      %s51 = sphi 0, %s49
      %s52 = sphi 0, %s51
      %s66 = sphi 0, %s52
      %s72 = sphi 0, %s74
      %s75 = sphi 0, %s72
      %s76 = sphi 0, %s75
      %s92 = sphi 0, %s76
    $region4: #{tpu_custom_call.1} parent=1 // loop_header_branch
      %18 = sbr.rel (%p16) target = $region8
    $region5: #{tpu_custom_call.1} parent=1 // loop_body
      %s20 = ssub.s32 %s15, 1
      %s21 = ssub.s32 %s15, 2
      %s22 = sadd.s32 %s15, 1
      %s23 = ssub.s32 %s15, %s22
      %p24 = scmp.eq.s32.totalorder %s23, 0
      %s26 = sadd.s32 %s25, 1
      %s27 = scalar_select %p24, %s25, %s26
      %p30 = pneg %p24
      %p31 = scmp.eq.s32.totalorder %s15, 1
      %p32 = por %p30, %p31
      %p33 = scmp.ne.s32.totalorder %s25, %s28
      %p34 = scmp.eq.s32.totalorder %s15, 0
      %p35 = por %p33, %p34
      %p36 = scmp.ne.s32.totalorder %s25, %s28
      %p37 = scmp.eq.s32.totalorder %s20, 1
      %p38 = por %p36, %p37
      %p39 = scmp.ne.s32.totalorder %s28, %s29
      %p40 = scmp.eq.s32.totalorder %s20, 0
      %p41 = por %p39, %p40
      %p42 = scmp.ne.s32.totalorder %s28, %s29
      %p43 = scmp.eq.s32.totalorder %s21, 1
      %p44 = por %p42, %p43
      %p46 = scmp.ne.s32.totalorder %s29, %s45
      %p47 = scmp.eq.s32.totalorder %s21, 0
      %p48 = por %p46, %p47
      %s50 = sadd.s32 %s49, 1
      %p53 = scmp.eq.s32.totalorder %s15, 1
      %p54 = scmp.ne.s32.totalorder %s49, %s51
      %p55 = scmp.eq.s32.totalorder %s15, 0
      %p56 = por %p54, %p55
      %p57 = scmp.ne.s32.totalorder %s49, %s51
      %p58 = scmp.eq.s32.totalorder %s20, 1
      %p59 = por %p57, %p58
      %p60 = scmp.ne.s32.totalorder %s51, %s52
      %p61 = scmp.eq.s32.totalorder %s20, 0
      %p62 = por %p60, %p61
      %p63 = scmp.ne.s32.totalorder %s51, %s52
      %p64 = scmp.eq.s32.totalorder %s21, 1
      %p65 = por %p63, %p64
      %p67 = scmp.ne.s32.totalorder %s52, %s66
      %p68 = scmp.eq.s32.totalorder %s21, 0
      %p69 = por %p67, %p68
      %s70 = ssub.s32 %s15, %s22
      %p71 = scmp.eq.s32.totalorder %s70, 0
      %s73 = sadd.s32 %s72, 1
      %s74 = scalar_select %p71, %s72, %s73
      %p77 = pneg %p71
      %p78 = scmp.eq.s32.totalorder %s15, 1
      %p79 = por %p77, %p78
      %p80 = scmp.ne.s32.totalorder %s72, %s75
      %p81 = scmp.eq.s32.totalorder %s15, 0
      %p82 = por %p80, %p81
      %p83 = scmp.ne.s32.totalorder %s72, %s75
      %p84 = scmp.eq.s32.totalorder %s20, 1
      %p85 = por %p83, %p84
      %p86 = scmp.ne.s32.totalorder %s75, %s76
      %p87 = scmp.eq.s32.totalorder %s20, 0
      %p88 = por %p86, %p87
      %p89 = scmp.ne.s32.totalorder %s75, %s76
      %p90 = scmp.eq.s32.totalorder %s21, 1
      %p91 = por %p89, %p90
      %p93 = scmp.ne.s32.totalorder %s76, %s92
      %p94 = scmp.eq.s32.totalorder %s21, 0
      %p95 = por %p93, %p94
      %p96 = scmp.le.s32.totalorder 1, %s15
      %p97 = scmp.lt.s32.totalorder %s15, 3
      %p98 = pnand %p96, %p97
      %p99 = pneg %p98
      // Predicated region
      $region9: #{tpu_custom_call.1} parent=5 // pred_check
        _
      $region10: #{tpu_custom_call.1} parent=5 // pred_check_branch
        %101 = sbr.rel (%p98) target = $region12
      $region11: #{tpu_custom_call.1} parent=5 // pred_region
        %s102 = ssub.s32 %s15, 1
        // Predicated region
        $region13: #{tpu_custom_call.1} parent=11 // pred_check
          %p103 = pneg %p62
        $region14: #{tpu_custom_call.1} parent=11 // pred_check_branch
          %105 = sbr.rel (%p103) target = $region16
        $region15: #{tpu_custom_call.1} parent=11 // pred_region
          %107 = vsyncadd [#allocation6], 0
          %s109 = sshll.u32 %s1, 4
          %s110 = int_to_ptr.hbm [resolvable:$true] %s109
          %s111 = sshll.u32 [#allocation5], 4
          %s112 = int_to_ptr.vmem [resolvable:$true] %s111
          %114 = dma.hbm_to_vmem [thread:$0]  %s110, 128, %s112, [#allocation6]
        $region16: #{tpu_custom_call.1} parent=11 // pred_fallthru
          _
      $region12: #{tpu_custom_call.1} parent=5 // pred_fallthru
        _
      %p115 = scmp.lt.s32.totalorder %s15, 2
      // Predicated region
      $region17: #{tpu_custom_call.1} parent=5 // pred_check
        %p116 = pneg %p115
      $region18: #{tpu_custom_call.1} parent=5 // pred_check_branch
        %118 = sbr.rel (%p116) target = $region20
      $region19: #{tpu_custom_call.1} parent=5 // pred_region
        // Predicated region
        $region21: #{tpu_custom_call.1} parent=19 // pred_check
          %p119 = pneg %p35
        $region22: #{tpu_custom_call.1} parent=19 // pred_check_branch
          %121 = sbr.rel (%p119) target = $region24
        $region23: #{tpu_custom_call.1} parent=19 // pred_region
          %s122 = sand.u32 %s25, 1
          %s123 = scalar_lea.sflag [#allocation3], %s122
          %s124 = sand.u32 %s25, 1
          %s125 = smul.addr %s124, 8
          %s126 = scalar_lea.vmem [#allocation2], %s125
          %128 = vsyncadd %s123, 0
          %s129 = smul.addr %s15, 8
          %s130 = scalar_lea.hbm %s0, %s129
          %s132 = sshll.u32 %s130, 4
          %s133 = int_to_ptr.hbm [resolvable:$true] %s132
          %s134 = sshll.u32 %s126, 4
          %s135 = int_to_ptr.vmem [resolvable:$true] %s134
          %137 = dma.hbm_to_vmem [thread:$0]  %s133, 128, %s135, %s123
        $region24: #{tpu_custom_call.1} parent=19 // pred_fallthru
          _
      $region20: #{tpu_custom_call.1} parent=5 // pred_fallthru
        _
      %p138 = scmp.le.s32.totalorder 1, %s15
      %p139 = scmp.lt.s32.totalorder %s15, 3
      %p140 = pnand %p138, %p139
      %p141 = pneg %p140
      // Predicated region
      $region25: #{tpu_custom_call.1} parent=5 // pred_check
        _
      $region26: #{tpu_custom_call.1} parent=5 // pred_check_branch
        %143 = sbr.rel (%p140) target = $region28
      $region27: #{tpu_custom_call.1} parent=5 // pred_region
        %s144 = ssub.s32 %s15, 1
        %s145 = sand.u32 %s28, 1
        %s146 = scalar_lea.sflag [#allocation3], %s145
        %s147 = sand.u32 %s28, 1
        %s148 = smul.addr %s147, 8
        %s149 = scalar_lea.vmem [#allocation2], %s148
        // Predicated region
        $region29: #{tpu_custom_call.1} parent=27 // pred_check
          %p150 = pneg %p41
        $region30: #{tpu_custom_call.1} parent=27 // pred_check_branch
          %152 = sbr.rel (%p150) target = $region32
        $region31: #{tpu_custom_call.1} parent=27 // pred_region
          %154 = dma.done %s146, 128
        $region32: #{tpu_custom_call.1} parent=27 // pred_fallthru
          _
        // Predicated region
        $region33: #{tpu_custom_call.1} parent=27 // pred_check
          %p155 = pneg %p62
        $region34: #{tpu_custom_call.1} parent=27 // pred_check_branch
          %157 = sbr.rel (%p155) target = $region36
        $region35: #{tpu_custom_call.1} parent=27 // pred_region
          %159 = dma.done [#allocation6], 128
        $region36: #{tpu_custom_call.1} parent=27 // pred_fallthru
          _
        %s160 = sand.u32 %s28, 1
        %s161 = scalar_lea.sflag [#allocation3], %s160
        %s162 = sand.u32 %s28, 1
        %s163 = smul.addr %s162, 8
        %s164 = scalar_lea.vmem [#allocation2], %s163
        %p165 = pneg %p41
        %p166 = pneg %p38
        %p167 = pneg %p62
        %p168 = pneg %p59
        %p169 = pneg %p88
        %p170 = pneg %p85
        %s171 = sand.u32 %s75, 1
        %s172 = scalar_lea.sflag [#allocation4], %s171
        %s173 = sand.u32 %s75, 1
        %s174 = smul.addr %s173, 8
        %s175 = scalar_lea.vmem [#allocation7], %s174
        %v176 = vld [vmem:[%s149] sm:$0xff]
        %v177 = vld [vmem:[#allocation5] sm:$0xff]
        %v178 = vadd.f32 %v176, %v177
        %179 = vst [vmem:[%s175] sm:$0xff] %v178
        %s180 = sand.u32 %s75, 1
        %s181 = scalar_lea.sflag [#allocation4], %s180
        %s182 = sand.u32 %s75, 1
        %s183 = smul.addr %s182, 8
        %s184 = scalar_lea.vmem [#allocation7], %s183
        // Predicated region
        $region37: #{tpu_custom_call.1} parent=27 // pred_check
          %p185 = pneg %p85
        $region38: #{tpu_custom_call.1} parent=27 // pred_check_branch
          %187 = sbr.rel (%p185) target = $region40
        $region39: #{tpu_custom_call.1} parent=27 // pred_region
          %189 = vsyncadd %s181, 0
          %s190 = smul.addr %s20, 8
          %s191 = scalar_lea.hbm %s2, %s190
          %s193 = sshll.u32 %s184, 4
          %s194 = int_to_ptr.vmem [resolvable:$true] %s193
          %s195 = sshll.u32 %s191, 4
          %s196 = int_to_ptr.hbm [resolvable:$true] %s195
          %198 = dma.vmem_to_hbm [thread:$0]  %s194, 128, %s196, %s181
        $region40: #{tpu_custom_call.1} parent=27 // pred_fallthru
          _
      $region28: #{tpu_custom_call.1} parent=5 // pred_fallthru
        _
      %p199 = scmp.le.s32.totalorder 2, %s15
      // Predicated region
      $region41: #{tpu_custom_call.1} parent=5 // pred_check
        %p200 = pneg %p199
      $region42: #{tpu_custom_call.1} parent=5 // pred_check_branch
        %202 = sbr.rel (%p200) target = $region44
      $region43: #{tpu_custom_call.1} parent=5 // pred_region
        %s203 = ssub.s32 %s15, 2
        // Predicated region
        $region45: #{tpu_custom_call.1} parent=43 // pred_check
          %p204 = pneg %p91
        $region46: #{tpu_custom_call.1} parent=43 // pred_check_branch
          %206 = sbr.rel (%p204) target = $region48
        $region47: #{tpu_custom_call.1} parent=43 // pred_region
          %s207 = sand.u32 %s76, 1
          %s208 = scalar_lea.sflag [#allocation4], %s207
          %s209 = sand.u32 %s76, 1
          %s210 = smul.addr %s209, 8
          %s211 = scalar_lea.vmem [#allocation7], %s210
          %213 = dma.done %s208, 128
        $region48: #{tpu_custom_call.1} parent=43 // pred_fallthru
          _
      $region44: #{tpu_custom_call.1} parent=5 // pred_fallthru
        _
    $region6: #{tpu_custom_call.1} parent=1 // loop_footer
      %s19 = sadd.s32 1, %s15
    $region7: #{tpu_custom_call.1} parent=1 // loop_footer_branch
      %14 = sbr.rel target = $region3
    $region8: #{tpu_custom_call.1} parent=1 // loop_exit
      _
    %214 = vsyncpa [#allocation3], 1
    %s215 = scalar_lea.sflag [#allocation3], 1
    %216 = vsyncpa %s215, 1
    %217 = vsyncpa [#allocation6], 1
    %218 = vsyncpa [#allocation4], 1
    %s219 = scalar_lea.sflag [#allocation4], 1
    %220 = vsyncpa %s219, 1

// kernel: tpu_custom_call.1
$region0: #{tpu_custom_call.1}
  #allocation0 [shape = 'u32[]', space=smem, size = 0x4, offset = 0x4, fixed_abs, tag = 'smem constant byte address 0x4 - core index']
  #allocation1 [shape = 'u32[72,128]{1,0:T(1,128)}', space=vmem, size = 0x9000, scoped, tag = 'internal scratch']
  %s0 = inlined_call_operand.hbm [shape: f32[16,32], index: 0, kind: input, shape index: {}]
  %s1 = inlined_call_operand.hbm [shape: bf16[32,96], index: 1, kind: input, shape index: {}]
  %s2 = inlined_call_operand.vmem [shape: f32[1,96], index: 2, kind: input, shape index: {}]
  %s3 = inlined_call_operand.hbm [shape: f32[16,96], index: 3, kind: output, shape index: {}]
  %s4 = sld [smem:[#allocation0]]
  $region30: #{tpu_custom_call.1} parent=0
    _
  %s6 = ssub.s32 1, %s4
  %s7 = scalar_select 0, %s6, %s4
  $region1: #{tpu_custom_call.1} parent=0
    #allocation2 [shape = 'u8[8192]{0}', space=vmem, size = 0x2000, scoped, tag = 'input window, operand 0, single buffered']
    #allocation3 [shape = 's32[1]{0}', space=sflag, size = 0x4, scoped, tag = 'scoped memory for tpu_custom_call.1']
    #allocation4 [shape = 's32[1]{0}', space=sflag, size = 0x4, scoped, tag = 'scoped memory for tpu_custom_call.1']
    #allocation5 [shape = 'u8[8192]{0}', space=vmem, size = 0x2000, scoped, tag = 'input window, operand 1, single buffered']
    #allocation6 [shape = 's32[1]{0}', space=sflag, size = 0x4, scoped, tag = 'scoped memory for tpu_custom_call.1']
    #allocation7 [shape = 'u8[8192]{0}', space=vmem, size = 0x2000, scoped, tag = 'output window, operand 0, single buffered']
    %8 = vsyncpa [#allocation3], 0
    %9 = vsyncpa [#allocation6], 0
    %10 = vsyncpa [#allocation4], 0
    // Predicated region
    $region2: #{tpu_custom_call.1} parent=1 // pred_check
      _
    $region3: #{tpu_custom_call.1} parent=1 // pred_check_branch
      %12 = sbr.rel (0) target = $region5
    $region4: #{tpu_custom_call.1} parent=1 // pred_region
      %14 = vsyncadd [#allocation3], 0
      %s15 = sshll.u32 %s0, 4
      %s16 = int_to_ptr.hbm [resolvable:$true] %s15
      %s17 = sshll.u32 [#allocation2], 4
      %s18 = int_to_ptr.vmem [resolvable:$true] %s17
      %23 = dma.hbm_to_vmem [thread:$0]  %s16, 256, %s18, [#allocation3], 128, 128, 8
    $region5: #{tpu_custom_call.1} parent=1 // pred_fallthru
      _
    // Predicated region
    $region6: #{tpu_custom_call.1} parent=1 // pred_check
      _
    $region7: #{tpu_custom_call.1} parent=1 // pred_check_branch
      %25 = sbr.rel (0) target = $region9
    $region8: #{tpu_custom_call.1} parent=1 // pred_region
      %27 = vsyncadd [#allocation6], 0
      %s28 = sshll.u32 %s1, 4
      %s29 = int_to_ptr.hbm [resolvable:$true] %s28
      %s30 = sshll.u32 [#allocation5], 4
      %s31 = int_to_ptr.vmem [resolvable:$true] %s30
      %36 = dma.hbm_to_vmem [thread:$0]  %s29, 256, %s31, [#allocation6], 64, 64, 4
    $region9: #{tpu_custom_call.1} parent=1 // pred_fallthru
      _
    // Predicated region
    $region10: #{tpu_custom_call.1} parent=1 // pred_check
      _
    $region11: #{tpu_custom_call.1} parent=1 // pred_check_branch
      %38 = sbr.rel (0) target = $region13
    $region12: #{tpu_custom_call.1} parent=1 // pred_region
      _
    $region13: #{tpu_custom_call.1} parent=1 // pred_fallthru
      _
    // Predicated region
    $region14: #{tpu_custom_call.1} parent=1 // pred_check
      _
    $region15: #{tpu_custom_call.1} parent=1 // pred_check_branch
      %40 = sbr.rel (0) target = $region17
    $region16: #{tpu_custom_call.1} parent=1 // pred_region
      %42 = dma.done [#allocation3], 256
    $region17: #{tpu_custom_call.1} parent=1 // pred_fallthru
      _
    // Predicated region
    $region18: #{tpu_custom_call.1} parent=1 // pred_check
      _
    $region19: #{tpu_custom_call.1} parent=1 // pred_check_branch
      %44 = sbr.rel (0) target = $region21
    $region20: #{tpu_custom_call.1} parent=1 // pred_region
      %46 = dma.done [#allocation6], 256
    $region21: #{tpu_custom_call.1} parent=1 // pred_fallthru
      _
    %v48 = vld [vmem:[#allocation2] sm:$0xff]
    %v49 = vld [vmem:[#allocation2 + $0x8] sm:$0xff]
    %v50 = vpack.c.bf16 %v49, %v48
    %v51 = vld [vmem:[#allocation5] sm:$0xf]
    %v52 = vld [vmem:[#allocation5 + $0x4] sm:$0xf]
    %v53 = vld [vmem:[#allocation5 + $0x8] sm:$0xf]
    %v54 = vld [vmem:[#allocation5 + $0xc] sm:$0xf]
    %v55 = vld [vmem:[%s2] sm:$0x1]
    %v57 = vperm.slane %v55, 0
    %v63 = vunpack.c.l.b16 %v51
    %v64 = vunpack.c.l.b16 %v52
    %v65 = vunpack.c.l.b16 %v53
    %v66 = vunpack.c.l.b16 %v54
    %v67 = vpack.c.b16 %v64, %v63
    %v68 = vpack.c.b16 %v66, %v65
    %vm71 = vcmask 261120
    %v73 = vsel %vm71, %v50, 0
    %75 = vmatpush.bf16.msra.mxu0 0
    %76 = vmatpush.bf16.msra.mxu0 0
    %77 = vmatpush.bf16.msra.mxu0 0
    %78 = vmatpush.bf16.msra.mxu0 0
    %79 = vmatpush.bf16.msra.mxu0 0
    %80 = vmatpush.bf16.msra.mxu0 0
    %81 = vmatpush.bf16.msra.mxu0 %v68
    %82 = vmatpush.bf16.msra.mxu0 %v67
    %83 = vmatmul.bf16.gmra.mxu0 %v73
    %v84 = vpop.f32.mrf.mxu0
    %v85 = vadd.f32 %v57, %v84
    %v86 = vpop.f32.mrf.mxu0
    %v87 = vadd.f32 %v57, %v86
    %88 = vdwg.mxu0
    %vm89 = vcmask 785408
    %90 = vst.msk [vmem:[#allocation7] sm:$0xff] %vm89, %v85
    %91 = vst.msk [vmem:[#allocation7 + $0x8] sm:$0xff] %vm89, %v87
    // Predicated region
    $region22: #{tpu_custom_call.1} parent=1 // pred_check
      _
    $region23: #{tpu_custom_call.1} parent=1 // pred_check_branch
      %93 = sbr.rel (0) target = $region25
    $region24: #{tpu_custom_call.1} parent=1 // pred_region
      %95 = vsyncadd [#allocation4], 0
      %s96 = sshll.u32 [#allocation7], 4
      %s97 = int_to_ptr.vmem [resolvable:$true] %s96
      %s98 = sshll.u32 %s3, 4
      %s99 = int_to_ptr.hbm [resolvable:$true] %s98
      %104 = dma.vmem_to_hbm [thread:$0]  %s97, 256, %s99, [#allocation4], 128, 128, 8
    $region25: #{tpu_custom_call.1} parent=1 // pred_fallthru
      _
    // Predicated region
    $region26: #{tpu_custom_call.1} parent=1 // pred_check
      _
    $region27: #{tpu_custom_call.1} parent=1 // pred_check_branch
      %106 = sbr.rel (0) target = $region29
    $region28: #{tpu_custom_call.1} parent=1 // pred_region
      %108 = dma.done [#allocation4], 256
    $region29: #{tpu_custom_call.1} parent=1 // pred_fallthru
      _
    %109 = vsyncpa [#allocation3], 1
    %110 = vsyncpa [#allocation6], 1
    %111 = vsyncpa [#allocation4], 1

</llo_original>
